<compile_context>
chip_gen: v7x
topology: tpu7x:2x2x1
jax: 0.10.0
libtpu: 0.0.40
codegen_flags: <defaults>
</compile_context>

<pallas_src>
import functools

import numpy as np
import jax
import jax.numpy as jnp
from jax import lax
from jax.experimental import pallas as pl
from jax.experimental.pallas import tpu as pltpu

KSIZE = 3                  # attention neighbourhood (3x3)
PAD = (KSIZE - 1) // 2     # 'auto' zero padding preserving spatial dims
LANES = 128


def _conv_attention_kernel(x_ref, w_ref, m_ref, o_ref, *, W, cout):
    """One grid step: `bblk` images.

    x_ref : (bblk, Cin, HWp)   bf16  flattened (zero-padded) images
    w_ref : (3*Cout, Cin)      bf16  Linear weight, rows reordered as [v; k; q]
    m_ref : (9, HWp)           f32   per-offset validity masks (1.0 inside image)
    o_ref : (bblk, Cout, HWp)  f32
    """
    bblk, _, HWp = x_ref.shape
    c2 = 2 * cout
    w = w_ref[...]                                               # (3C, Cin) bf16
    offsets = [(di, dj) for di in (-1, 0, 1) for dj in (-1, 0, 1)]

    for b in range(bblk):                                        # static unroll
        # --- fused QKV projection: one bf16 MXU matmul, f32 accumulation ---------
        vkq = jnp.dot(w, x_ref[b], preferred_element_type=jnp.float32)  # (3C, HWp)
        vk = vkq[:c2]                                            # [v; k] slab, rolls as one
        q = vkq[c2:]                                             # (C, HWp)
        # q placed over the k rows of a (2C, HWp) slab so the per-offset score is a
        # plain full-slab multiply + sublane reduce (no per-offset sublane slicing).
        qpad = jnp.concatenate([jnp.zeros_like(q), q], axis=0)   # (2C, HWp)

        # --- single online-softmax pass over the 9 neighbour offsets -------------
        m_run = l_run = acc = None
        for p, (di, dj) in enumerate(offsets):
            shift = (-(di * W + dj)) % HWp
            # r[:, n] = vk[:, n + di*W + dj]  (wrap-around lanes are masked below)
            r = vk if shift == 0 else pltpu.roll(vk, shift, axis=1)
            msk = m_ref[p:p + 1, :]                              # (1, HWp) in {0., 1.}
            s = jnp.sum(qpad * r, axis=0, keepdims=True) * msk   # padded key -> score 0
            if p == 0:
                m_run = s
                l_run = jnp.ones_like(s)                         # exp(s - s)
                acc = msk * r                                    # padded value -> weight 0
            else:
                m_new = jnp.maximum(m_run, s)
                alpha = jnp.exp(m_run - m_new)
                e = jnp.exp(s - m_new)
                l_run = alpha * l_run + e                        # pads contribute exp(0-m)
                acc = alpha * acc + (e * msk) * r                # ...but weight 0 on values
                m_run = m_new

        # --- normalise: approx EUP reciprocal + one Newton step (~exact f32) -----
        inv = pl.reciprocal(l_run, approx=True)
        inv = inv * (2.0 - l_run * inv)
        o_ref[b] = (acc[:cout] * inv).astype(o_ref.dtype)        # v rows of the accumulator


def _pick_batch_block(B, max_bblk=8):
    """Largest divisor of B (<= max_bblk) that still leaves >= 2 grid steps,
    amortising per-step overhead without starving v7x's second TensorCore."""
    best = 1
    for d in range(2, min(B // 2, max_bblk) + 1):
        if B % d == 0:
            best = d
    return best


def _neighbour_masks(H, W, HWp):
    """(9, HWp) float32: mask[p, n] = 1 iff the p-th 3x3 neighbour of flat position n
    lies inside the HxW image (and n itself is a real, non-pad position)."""
    idx = np.arange(HWp)
    row, col, inside = idx // W, idx % W, idx < H * W
    masks = []
    for di in (-1, 0, 1):
        for dj in (-1, 0, 1):
            ok = inside.copy()
            if di == -1:
                ok &= row >= 1
            if di == 1:
                ok &= row <= H - 2
            if dj == -1:
                ok &= col >= 1
            if dj == 1:
                ok &= col <= W - 2
            masks.append(ok)
    return np.stack(masks).astype(np.float32)


def conv_attention(x_nchw, weight):
    """ConvAttention forward (kernel_size=3, stride=1, 'auto' zero padding).

    x_nchw : (B, Cin, H, W) float32
    weight : (3*Cout, Cin)  float32   (torch.nn.Linear weight layout: [q; k; v] rows)
    returns: (B, Cout, H, W) float32
    """
    B, Cin, H, W = x_nchw.shape
    Cout = weight.shape[0] // 3
    HW = H * W
    HWp = ((HW + LANES - 1) // LANES) * LANES                    # lane-dense spatial axis

    # Free row-major reshape; zero-pad the flattened spatial tail; bf16 halves DMA.
    x = x_nchw.reshape(B, Cin, HW)
    if HWp != HW:
        x = jnp.pad(x, ((0, 0), (0, 0), (0, HWp - HW)))
    x = x.astype(jnp.bfloat16)

    # Reorder the tiny Linear weight so the fused matmul result is [v; k; q] rows:
    # the [v; k] slab (rows 0:2*Cout) rolls as one unit, q sits on aligned rows.
    w3 = weight.reshape(3, Cout, Cin)
    w_vkq = jnp.concatenate([w3[2], w3[1], w3[0]], axis=0).astype(jnp.bfloat16)

    masks = jnp.asarray(_neighbour_masks(H, W, HWp))             # (9, HWp) f32

    bblk = _pick_batch_block(B)
    grid = (B // bblk,)

    kernel = functools.partial(_conv_attention_kernel, W=W, cout=Cout)

    # VMEM budget: double-buffered in/out blocks + in-kernel f32 slabs. Raise the
    # scoped limit only when needed; stay below v7x's 64 MiB physical VMEM
    # (v5e/v6e have 128 MiB of headroom).
    in_out_bytes = 2 * bblk * (Cin * HWp * 2 + Cout * HWp * 4)
    live_bytes = 8 * (2 * Cout) * HWp * 4
    est = in_out_bytes + live_bytes + 2 * (9 * HWp * 4 + 3 * Cout * Cin * 2)
    cp = dict(dimension_semantics=("parallel",))
    if est > 16 * 2 ** 20:
        cp["vmem_limit_bytes"] = min(2 * est, 60 * 2 ** 20)
    compiler_params = pltpu.CompilerParams(**cp)

    out = pl.pallas_call(
        kernel,
        out_shape=jax.ShapeDtypeStruct((B, Cout, HWp), jnp.float32),
        grid_spec=pltpu.PrefetchScalarGridSpec(
            num_scalar_prefetch=0,
            grid=grid,
            in_specs=[
                pl.BlockSpec((bblk, Cin, HWp), lambda i: (i, 0, 0)),
                pl.BlockSpec((3 * Cout, Cin), lambda i: (0, 0)),
                pl.BlockSpec((9, HWp), lambda i: (0, 0)),
            ],
            out_specs=pl.BlockSpec((bblk, Cout, HWp), lambda i: (i, 0, 0)),
        ),
        compiler_params=compiler_params,
    )(x, w_vkq, masks)

    return out[..., :HW].reshape(B, Cout, H, W)


def conv_attention_ref(x_nchw, weight):
    """Pure-JAX f32 reference for correctness checking."""
    B, Cin, H, W = x_nchw.shape
    Cout = weight.shape[0] // 3
    xl = jnp.transpose(x_nchw, (0, 2, 3, 1))                     # (B, H, W, Cin)
    qkv = jnp.einsum('bhwc,oc->bhwo', xl, weight,
                     precision=lax.Precision.HIGHEST)            # (B, H, W, 3*Cout)
    qkv = jnp.transpose(qkv, (0, 3, 1, 2))                       # (B, 3*Cout, H, W)
    q, k, v = jnp.split(qkv, 3, axis=1)
    kp = jnp.pad(k, ((0, 0), (0, 0), (PAD, PAD), (PAD, PAD)))
    vp = jnp.pad(v, ((0, 0), (0, 0), (PAD, PAD), (PAD, PAD)))
    scores, vpatches = [], []
    for di in range(KSIZE):
        for dj in range(KSIZE):
            scores.append(jnp.sum(q * kp[:, :, di:di + H, dj:dj + W], axis=1))
            vpatches.append(vp[:, :, di:di + H, dj:dj + W])
    attn = jax.nn.softmax(jnp.stack(scores, axis=-1), axis=-1)   # (B, H, W, 9)
    out = jnp.zeros((B, Cout, H, W), jnp.float32)
    for p in range(KSIZE * KSIZE):
        out = out + attn[..., p][:, None] * vpatches[p]
    return out


if __name__ == "__main__":
    B, Cin, Cout, H, W = 2, 4, 4, 16, 16

    key = jax.random.PRNGKey(0)
    kx, kw = jax.random.split(key)
    x = jax.random.normal(kx, (B, Cin, H, W), jnp.float32)
    # deterministic init mimicking torch.nn.Linear default U(-1/sqrt(fan_in), 1/sqrt(fan_in))
    bound = 1.0 / (Cin ** 0.5)
    weight = jax.random.uniform(kw, (3 * Cout, Cin), jnp.float32, -bound, bound)

    y = conv_attention(x, weight)
    y = jax.block_until_ready(y)
    assert y.shape == (B, Cout, H, W)

    y_ref = conv_attention_ref(x, weight)
    # Tolerance: the qkv projection runs in bf16 with f32 accumulation; everything
    # after it (scores, softmax, Newton-refined reciprocal) is f32.
    np.testing.assert_allclose(np.asarray(y), np.asarray(y_ref), rtol=3e-2, atol=3e-2)

    print("KERNEL_OK")
</pallas_src>

<mosaic_0001>
module attributes {stable_mosaic.version = 11 : i64} {
  func.func @_conv_attention_kernel(%arg0: i32, %arg1: memref<1x4x256xbf16, #tpu.memory_space<vmem>>, %arg2: memref<12x4xbf16, #tpu.memory_space<vmem>>, %arg3: memref<9x256xf32, #tpu.memory_space<vmem>>, %arg4: memref<1x4x256xf32, #tpu.memory_space<vmem>>) attributes {dimension_semantics = [#tpu.dimension_semantics<parallel>], iteration_bounds = array<i64: 2>, scalar_prefetch = 0 : i64, scratch_operands = 0 : i64, tpu.core_type = #tpu.core_type<tc>, window_params = [{transform_indices = @transform_0, window_bounds = array<i64: 1, 4, 256>}, {pipeline_mode = #tpu.pipeline_mode<synchronous>, transform_indices = @transform_1, window_bounds = array<i64: 12, 4>}, {pipeline_mode = #tpu.pipeline_mode<synchronous>, transform_indices = @transform_2, window_bounds = array<i64: 9, 256>}, {transform_indices = @transform_3, window_bounds = array<i64: 1, 4, 256>}]} {
    %c0 = arith.constant 0 : index
    %c0_0 = arith.constant 0 : index
    %0 = vector.load %arg2[%c0, %c0_0] : memref<12x4xbf16, #tpu.memory_space<vmem>>, vector<12x4xbf16>
    %c0_1 = arith.constant 0 : index
    %c0_2 = arith.constant 0 : index
    %c0_3 = arith.constant 0 : index
    %1 = vector.load %arg1[%c0_1, %c0_2, %c0_3] : memref<1x4x256xbf16, #tpu.memory_space<vmem>>, vector<1x4x256xbf16>
    %2 = vector.shape_cast %1 : vector<1x4x256xbf16> to vector<4x256xbf16>
    %cst = arith.constant dense<0.000000e+00> : vector<12x256xf32>
    %3 = tpu.matmul %0, %2, %cst {dimension_numbers = #tpu.dot_dimension_numbers<[1], [0], [0], [1], [0, 0, 1, 1], [], []>} : vector<12x4xbf16>, vector<4x256xbf16>, vector<12x256xf32> -> vector<12x256xf32>
    %4 = vector.extract_strided_slice %3 {offsets = [0, 0], sizes = [8, 256], strides = [1, 1]} : vector<12x256xf32> to vector<8x256xf32>
    %5 = vector.extract_strided_slice %3 {offsets = [8, 0], sizes = [4, 256], strides = [1, 1]} : vector<12x256xf32> to vector<4x256xf32>
    %cst_4 = arith.constant 0.000000e+00 : f32
    %6 = vector.broadcast %cst_4 : f32 to vector<4x256xf32>
    %7 = tpu.concatenate %6, %5 in 0 : vector<4x256xf32>, vector<4x256xf32> -> vector<8x256xf32>
    %c17_i32 = arith.constant 17 : i32
    %8 = tpu.dynamic_rotate %4 by %c17_i32 dim 1 : vector<8x256xf32>, i32 -> vector<8x256xf32>
    %c0_5 = arith.constant 0 : index
    %c0_6 = arith.constant 0 : index
    %9 = vector.load %arg3[%c0_5, %c0_6] : memref<9x256xf32, #tpu.memory_space<vmem>>, vector<1x256xf32>
    %10 = arith.mulf %7, %8 : vector<8x256xf32>
    %cst_7 = arith.constant dense<0.000000e+00> : vector<256xf32>
    %11 = vector.multi_reduction <add>, %10, %cst_7 [0] : vector<8x256xf32> to vector<256xf32>
    %12 = vector.shape_cast %11 : vector<256xf32> to vector<1x256xf32>
    %13 = arith.mulf %12, %9 : vector<1x256xf32>
    %cst_8 = arith.constant 1.000000e+00 : f32
    %14 = vector.broadcast %cst_8 : f32 to vector<1x256xf32>
    %15 = vector.broadcast %9 : vector<1x256xf32> to vector<8x256xf32>
    %16 = arith.mulf %15, %8 : vector<8x256xf32>
    %c16_i32 = arith.constant 16 : i32
    %17 = tpu.dynamic_rotate %4 by %c16_i32 dim 1 : vector<8x256xf32>, i32 -> vector<8x256xf32>
    %c1 = arith.constant 1 : index
    %c0_9 = arith.constant 0 : index
    %18 = vector.load %arg3[%c1, %c0_9] : memref<9x256xf32, #tpu.memory_space<vmem>>, vector<1x256xf32>
    %19 = arith.mulf %7, %17 : vector<8x256xf32>
    %cst_10 = arith.constant dense<0.000000e+00> : vector<256xf32>
    %20 = vector.multi_reduction <add>, %19, %cst_10 [0] : vector<8x256xf32> to vector<256xf32>
    %21 = vector.shape_cast %20 : vector<256xf32> to vector<1x256xf32>
    %22 = arith.mulf %21, %18 : vector<1x256xf32>
    %23 = arith.maximumf %13, %22 : vector<1x256xf32>
    %24 = arith.subf %13, %23 : vector<1x256xf32>
    %25 = math.exp %24 : vector<1x256xf32>
    %26 = arith.subf %22, %23 : vector<1x256xf32>
    %27 = math.exp %26 : vector<1x256xf32>
    %28 = arith.mulf %25, %14 : vector<1x256xf32>
    %29 = arith.addf %28, %27 : vector<1x256xf32>
    %30 = vector.broadcast %25 : vector<1x256xf32> to vector<8x256xf32>
    %31 = arith.mulf %30, %16 : vector<8x256xf32>
    %32 = arith.mulf %27, %18 : vector<1x256xf32>
    %33 = vector.broadcast %32 : vector<1x256xf32> to vector<8x256xf32>
    %34 = arith.mulf %33, %17 : vector<8x256xf32>
    %35 = arith.addf %31, %34 : vector<8x256xf32>
    %c15_i32 = arith.constant 15 : i32
    %36 = tpu.dynamic_rotate %4 by %c15_i32 dim 1 : vector<8x256xf32>, i32 -> vector<8x256xf32>
    %c2 = arith.constant 2 : index
    %c0_11 = arith.constant 0 : index
    %37 = vector.load %arg3[%c2, %c0_11] : memref<9x256xf32, #tpu.memory_space<vmem>>, vector<1x256xf32>
    %38 = arith.mulf %7, %36 : vector<8x256xf32>
    %cst_12 = arith.constant dense<0.000000e+00> : vector<256xf32>
    %39 = vector.multi_reduction <add>, %38, %cst_12 [0] : vector<8x256xf32> to vector<256xf32>
    %40 = vector.shape_cast %39 : vector<256xf32> to vector<1x256xf32>
    %41 = arith.mulf %40, %37 : vector<1x256xf32>
    %42 = arith.maximumf %23, %41 : vector<1x256xf32>
    %43 = arith.subf %23, %42 : vector<1x256xf32>
    %44 = math.exp %43 : vector<1x256xf32>
    %45 = arith.subf %41, %42 : vector<1x256xf32>
    %46 = math.exp %45 : vector<1x256xf32>
    %47 = arith.mulf %44, %29 : vector<1x256xf32>
    %48 = arith.addf %47, %46 : vector<1x256xf32>
    %49 = vector.broadcast %44 : vector<1x256xf32> to vector<8x256xf32>
    %50 = arith.mulf %49, %35 : vector<8x256xf32>
    %51 = arith.mulf %46, %37 : vector<1x256xf32>
    %52 = vector.broadcast %51 : vector<1x256xf32> to vector<8x256xf32>
    %53 = arith.mulf %52, %36 : vector<8x256xf32>
    %54 = arith.addf %50, %53 : vector<8x256xf32>
    %c1_i32 = arith.constant 1 : i32
    %55 = tpu.dynamic_rotate %4 by %c1_i32 dim 1 : vector<8x256xf32>, i32 -> vector<8x256xf32>
    %c3 = arith.constant 3 : index
    %c0_13 = arith.constant 0 : index
    %56 = vector.load %arg3[%c3, %c0_13] : memref<9x256xf32, #tpu.memory_space<vmem>>, vector<1x256xf32>
    %57 = arith.mulf %7, %55 : vector<8x256xf32>
    %cst_14 = arith.constant dense<0.000000e+00> : vector<256xf32>
    %58 = vector.multi_reduction <add>, %57, %cst_14 [0] : vector<8x256xf32> to vector<256xf32>
    %59 = vector.shape_cast %58 : vector<256xf32> to vector<1x256xf32>
    %60 = arith.mulf %59, %56 : vector<1x256xf32>
    %61 = arith.maximumf %42, %60 : vector<1x256xf32>
    %62 = arith.subf %42, %61 : vector<1x256xf32>
    %63 = math.exp %62 : vector<1x256xf32>
    %64 = arith.subf %60, %61 : vector<1x256xf32>
    %65 = math.exp %64 : vector<1x256xf32>
    %66 = arith.mulf %63, %48 : vector<1x256xf32>
    %67 = arith.addf %66, %65 : vector<1x256xf32>
    %68 = vector.broadcast %63 : vector<1x256xf32> to vector<8x256xf32>
    %69 = arith.mulf %68, %54 : vector<8x256xf32>
    %70 = arith.mulf %65, %56 : vector<1x256xf32>
    %71 = vector.broadcast %70 : vector<1x256xf32> to vector<8x256xf32>
    %72 = arith.mulf %71, %55 : vector<8x256xf32>
    %73 = arith.addf %69, %72 : vector<8x256xf32>
    %c4 = arith.constant 4 : index
    %c0_15 = arith.constant 0 : index
    %74 = vector.load %arg3[%c4, %c0_15] : memref<9x256xf32, #tpu.memory_space<vmem>>, vector<1x256xf32>
    %75 = arith.mulf %7, %4 : vector<8x256xf32>
    %cst_16 = arith.constant dense<0.000000e+00> : vector<256xf32>
    %76 = vector.multi_reduction <add>, %75, %cst_16 [0] : vector<8x256xf32> to vector<256xf32>
    %77 = vector.shape_cast %76 : vector<256xf32> to vector<1x256xf32>
    %78 = arith.mulf %77, %74 : vector<1x256xf32>
    %79 = arith.maximumf %61, %78 : vector<1x256xf32>
    %80 = arith.subf %61, %79 : vector<1x256xf32>
    %81 = math.exp %80 : vector<1x256xf32>
    %82 = arith.subf %78, %79 : vector<1x256xf32>
    %83 = math.exp %82 : vector<1x256xf32>
    %84 = arith.mulf %81, %67 : vector<1x256xf32>
    %85 = arith.addf %84, %83 : vector<1x256xf32>
    %86 = vector.broadcast %81 : vector<1x256xf32> to vector<8x256xf32>
    %87 = arith.mulf %86, %73 : vector<8x256xf32>
    %88 = arith.mulf %83, %74 : vector<1x256xf32>
    %89 = vector.broadcast %88 : vector<1x256xf32> to vector<8x256xf32>
    %90 = arith.mulf %89, %4 : vector<8x256xf32>
    %91 = arith.addf %87, %90 : vector<8x256xf32>
    %c255_i32 = arith.constant 255 : i32
    %92 = tpu.dynamic_rotate %4 by %c255_i32 dim 1 : vector<8x256xf32>, i32 -> vector<8x256xf32>
    %c5 = arith.constant 5 : index
    %c0_17 = arith.constant 0 : index
    %93 = vector.load %arg3[%c5, %c0_17] : memref<9x256xf32, #tpu.memory_space<vmem>>, vector<1x256xf32>
    %94 = arith.mulf %7, %92 : vector<8x256xf32>
    %cst_18 = arith.constant dense<0.000000e+00> : vector<256xf32>
    %95 = vector.multi_reduction <add>, %94, %cst_18 [0] : vector<8x256xf32> to vector<256xf32>
    %96 = vector.shape_cast %95 : vector<256xf32> to vector<1x256xf32>
    %97 = arith.mulf %96, %93 : vector<1x256xf32>
    %98 = arith.maximumf %79, %97 : vector<1x256xf32>
    %99 = arith.subf %79, %98 : vector<1x256xf32>
    %100 = math.exp %99 : vector<1x256xf32>
    %101 = arith.subf %97, %98 : vector<1x256xf32>
    %102 = math.exp %101 : vector<1x256xf32>
    %103 = arith.mulf %100, %85 : vector<1x256xf32>
    %104 = arith.addf %103, %102 : vector<1x256xf32>
    %105 = vector.broadcast %100 : vector<1x256xf32> to vector<8x256xf32>
    %106 = arith.mulf %105, %91 : vector<8x256xf32>
    %107 = arith.mulf %102, %93 : vector<1x256xf32>
    %108 = vector.broadcast %107 : vector<1x256xf32> to vector<8x256xf32>
    %109 = arith.mulf %108, %92 : vector<8x256xf32>
    %110 = arith.addf %106, %109 : vector<8x256xf32>
    %c241_i32 = arith.constant 241 : i32
    %111 = tpu.dynamic_rotate %4 by %c241_i32 dim 1 : vector<8x256xf32>, i32 -> vector<8x256xf32>
    %c6 = arith.constant 6 : index
    %c0_19 = arith.constant 0 : index
    %112 = vector.load %arg3[%c6, %c0_19] : memref<9x256xf32, #tpu.memory_space<vmem>>, vector<1x256xf32>
    %113 = arith.mulf %7, %111 : vector<8x256xf32>
    %cst_20 = arith.constant dense<0.000000e+00> : vector<256xf32>
    %114 = vector.multi_reduction <add>, %113, %cst_20 [0] : vector<8x256xf32> to vector<256xf32>
    %115 = vector.shape_cast %114 : vector<256xf32> to vector<1x256xf32>
    %116 = arith.mulf %115, %112 : vector<1x256xf32>
    %117 = arith.maximumf %98, %116 : vector<1x256xf32>
    %118 = arith.subf %98, %117 : vector<1x256xf32>
    %119 = math.exp %118 : vector<1x256xf32>
    %120 = arith.subf %116, %117 : vector<1x256xf32>
    %121 = math.exp %120 : vector<1x256xf32>
    %122 = arith.mulf %119, %104 : vector<1x256xf32>
    %123 = arith.addf %122, %121 : vector<1x256xf32>
    %124 = vector.broadcast %119 : vector<1x256xf32> to vector<8x256xf32>
    %125 = arith.mulf %124, %110 : vector<8x256xf32>
    %126 = arith.mulf %121, %112 : vector<1x256xf32>
    %127 = vector.broadcast %126 : vector<1x256xf32> to vector<8x256xf32>
    %128 = arith.mulf %127, %111 : vector<8x256xf32>
    %129 = arith.addf %125, %128 : vector<8x256xf32>
    %c240_i32 = arith.constant 240 : i32
    %130 = tpu.dynamic_rotate %4 by %c240_i32 dim 1 : vector<8x256xf32>, i32 -> vector<8x256xf32>
    %c7 = arith.constant 7 : index
    %c0_21 = arith.constant 0 : index
    %131 = vector.load %arg3[%c7, %c0_21] : memref<9x256xf32, #tpu.memory_space<vmem>>, vector<1x256xf32>
    %132 = arith.mulf %7, %130 : vector<8x256xf32>
    %cst_22 = arith.constant dense<0.000000e+00> : vector<256xf32>
    %133 = vector.multi_reduction <add>, %132, %cst_22 [0] : vector<8x256xf32> to vector<256xf32>
    %134 = vector.shape_cast %133 : vector<256xf32> to vector<1x256xf32>
    %135 = arith.mulf %134, %131 : vector<1x256xf32>
    %136 = arith.maximumf %117, %135 : vector<1x256xf32>
    %137 = arith.subf %117, %136 : vector<1x256xf32>
    %138 = math.exp %137 : vector<1x256xf32>
    %139 = arith.subf %135, %136 : vector<1x256xf32>
    %140 = math.exp %139 : vector<1x256xf32>
    %141 = arith.mulf %138, %123 : vector<1x256xf32>
    %142 = arith.addf %141, %140 : vector<1x256xf32>
    %143 = vector.broadcast %138 : vector<1x256xf32> to vector<8x256xf32>
    %144 = arith.mulf %143, %129 : vector<8x256xf32>
    %145 = arith.mulf %140, %131 : vector<1x256xf32>
    %146 = vector.broadcast %145 : vector<1x256xf32> to vector<8x256xf32>
    %147 = arith.mulf %146, %130 : vector<8x256xf32>
    %148 = arith.addf %144, %147 : vector<8x256xf32>
    %c239_i32 = arith.constant 239 : i32
    %149 = tpu.dynamic_rotate %4 by %c239_i32 dim 1 : vector<8x256xf32>, i32 -> vector<8x256xf32>
    %c8 = arith.constant 8 : index
    %c0_23 = arith.constant 0 : index
    %150 = vector.load %arg3[%c8, %c0_23] : memref<9x256xf32, #tpu.memory_space<vmem>>, vector<1x256xf32>
    %151 = arith.mulf %7, %149 : vector<8x256xf32>
    %cst_24 = arith.constant dense<0.000000e+00> : vector<256xf32>
    %152 = vector.multi_reduction <add>, %151, %cst_24 [0] : vector<8x256xf32> to vector<256xf32>
    %153 = vector.shape_cast %152 : vector<256xf32> to vector<1x256xf32>
    %154 = arith.mulf %153, %150 : vector<1x256xf32>
    %155 = arith.maximumf %136, %154 : vector<1x256xf32>
    %156 = arith.subf %136, %155 : vector<1x256xf32>
    %157 = math.exp %156 : vector<1x256xf32>
    %158 = arith.subf %154, %155 : vector<1x256xf32>
    %159 = math.exp %158 : vector<1x256xf32>
    %160 = arith.mulf %157, %142 : vector<1x256xf32>
    %161 = arith.addf %160, %159 : vector<1x256xf32>
    %162 = vector.broadcast %157 : vector<1x256xf32> to vector<8x256xf32>
    %163 = arith.mulf %162, %148 : vector<8x256xf32>
    %164 = arith.mulf %159, %150 : vector<1x256xf32>
    %165 = vector.broadcast %164 : vector<1x256xf32> to vector<8x256xf32>
    %166 = arith.mulf %165, %149 : vector<8x256xf32>
    %167 = arith.addf %163, %166 : vector<8x256xf32>
    %168 = tpu.reciprocal %161 {approx = true} : vector<1x256xf32> -> vector<1x256xf32>
    %169 = arith.mulf %161, %168 : vector<1x256xf32>
    %cst_25 = arith.constant 2.000000e+00 : f32
    %170 = vector.broadcast %cst_25 : f32 to vector<1x256xf32>
    %171 = arith.subf %170, %169 : vector<1x256xf32>
    %172 = arith.mulf %168, %171 : vector<1x256xf32>
    %173 = vector.extract_strided_slice %167 {offsets = [0, 0], sizes = [4, 256], strides = [1, 1]} : vector<8x256xf32> to vector<4x256xf32>
    %174 = vector.broadcast %172 : vector<1x256xf32> to vector<4x256xf32>
    %175 = arith.mulf %173, %174 : vector<4x256xf32>
    %c0_26 = arith.constant 0 : index
    %c0_27 = arith.constant 0 : index
    %c0_28 = arith.constant 0 : index
    %176 = vector.load %arg4[%c0_26, %c0_27, %c0_28] : memref<1x4x256xf32, #tpu.memory_space<vmem>>, vector<1x4x256xf32>
    %177 = vector.shape_cast %176 : vector<1x4x256xf32> to vector<4x256xf32>
    %178 = vector.shape_cast %175 : vector<4x256xf32> to vector<1x4x256xf32>
    tpu.vector_store %arg4[%c0_26, %c0_27, %c0_28], %178 {strides = array<i32>} : memref<1x4x256xf32, #tpu.memory_space<vmem>>, vector<1x4x256xf32>,
    return
  }
  func.func @transform_0(%arg0: i32) -> (i32, i32, i32) {
    %c0_i32 = arith.constant 0 : i32
    %c0_i32_0 = arith.constant 0 : i32
    %c0_i32_1 = arith.constant 0 : i32
    return %arg0, %c0_i32, %c0_i32_0 : i32, i32, i32
  }
  func.func @transform_1(%arg0: i32) -> (i32, i32) {
    %c0_i32 = arith.constant 0 : i32
    %c0_i32_0 = arith.constant 0 : i32
    %c0_i32_1 = arith.constant 0 : i32
    return %c0_i32, %c0_i32_0 : i32, i32
  }
  func.func @transform_2(%arg0: i32) -> (i32, i32) {
    %c0_i32 = arith.constant 0 : i32
    %c0_i32_0 = arith.constant 0 : i32
    %c0_i32_1 = arith.constant 0 : i32
    return %c0_i32, %c0_i32_0 : i32, i32
  }
  func.func @transform_3(%arg0: i32) -> (i32, i32, i32) {
    %c0_i32 = arith.constant 0 : i32
    %c0_i32_0 = arith.constant 0 : i32
    %c0_i32_1 = arith.constant 0 : i32
    return %arg0, %c0_i32, %c0_i32_0 : i32, i32, i32
  }
}

</mosaic_0001>

<llo_original>
// kernel: tpu_custom_call.1
$region0: #{tpu_custom_call.1}
  #allocation0 [shape = 'u32[]', space=smem, size = 0x4, offset = 0x4, fixed_abs, tag = 'smem constant byte address 0x4 - core index']
  #allocation1 [shape = 'u32[144,128]{1,0:T(1,128)}', space=vmem, size = 0x12000, scoped, tag = 'internal scratch']
  %s0 = inlined_call_operand.vmem [shape: bf16[2,4,256], index: 0, kind: input, shape index: {}]
  %s1 = inlined_call_operand.vmem [shape: bf16[12,4], index: 1, kind: input, shape index: {}]
  %s2 = inlined_call_operand.hbm [shape: f32[9,256], index: 2, kind: input, shape index: {}]
  %s3 = inlined_call_operand.hbm [shape: f32[2,4,256], index: 3, kind: output, shape index: {}]
  %s4 = sld [smem:[#allocation0]]
  $region49: #{tpu_custom_call.1} parent=0
    _
  %s6 = ssub.s32 1, %s4
  %s7 = scalar_select 0, %s6, %s4
  $region1: #{tpu_custom_call.1} parent=0
    #allocation2 [shape = 'u8[16384]{0}', space=vmem, size = 0x4000, scoped, tag = 'input window, operand 2, single buffered']
    #allocation3 [shape = 's32[2]{0}', space=sflag, size = 0x8, scoped, tag = 'scoped memory for tpu_custom_call.1']
    #allocation4 [shape = 's32[2]{0}', space=sflag, size = 0x8, scoped, tag = 'scoped memory for tpu_custom_call.1']
    #allocation5 [shape = 'u8[8192]{0}', space=vmem, size = 0x2000, scoped, tag = 'output window, operand 0']
    %8 = vsyncpa [#allocation3], 0
    %9 = vsyncpa [#allocation4], 0
    %s10 = scalar_lea.sflag [#allocation4], 1
    %11 = vsyncpa %s10, 0
    loop: start=0, step=1, limit=4
    $region2: #{tpu_custom_call.1} parent=1 // loop_pre_header
      _
    $region3: #{tpu_custom_call.1} parent=1 // loop_header
      %s13 = sphi 0, %s17
      %p14 = scmp.ge.s32.totalorder %s13, 4
      %s23 = sphi 0, %s25
      %s26 = sphi 0, %s23
      %s27 = sphi 0, %s26
      %s43 = sphi 0, %s27
      %s47 = sphi 0, %s47
      %s49 = sphi 0, %s47
      %s50 = sphi 0, %s49
      %s64 = sphi 0, %s50
      %s68 = sphi 0, %s68
      %s70 = sphi 0, %s68
      %s71 = sphi 0, %s70
      %s85 = sphi 0, %s71
      %s91 = sphi 0, %s93
      %s94 = sphi 0, %s91
      %s95 = sphi 0, %s94
      %s111 = sphi 0, %s95
    $region4: #{tpu_custom_call.1} parent=1 // loop_header_branch
      %16 = sbr.rel (%p14) target = $region8
    $region5: #{tpu_custom_call.1} parent=1 // loop_body
      %s18 = ssub.s32 %s13, 1
      %s19 = ssub.s32 %s13, 2
      %s20 = sadd.s32 %s13, 1
      %s21 = ssub.s32 %s13, %s20
      %p22 = scmp.eq.s32.totalorder %s21, 0
      %s24 = sadd.s32 %s23, 1
      %s25 = scalar_select %p22, %s23, %s24
      %p28 = pneg %p22
      %p29 = scmp.eq.s32.totalorder %s13, 1
      %p30 = por %p28, %p29
      %p31 = scmp.ne.s32.totalorder %s23, %s26
      %p32 = scmp.eq.s32.totalorder %s13, 0
      %p33 = por %p31, %p32
      %p34 = scmp.ne.s32.totalorder %s23, %s26
      %p35 = scmp.eq.s32.totalorder %s18, 1
      %p36 = por %p34, %p35
      %p37 = scmp.ne.s32.totalorder %s26, %s27
      %p38 = scmp.eq.s32.totalorder %s18, 0
      %p39 = por %p37, %p38
      %p40 = scmp.ne.s32.totalorder %s26, %s27
      %p41 = scmp.eq.s32.totalorder %s19, 1
      %p42 = por %p40, %p41
      %p44 = scmp.ne.s32.totalorder %s27, %s43
      %p45 = scmp.eq.s32.totalorder %s19, 0
      %p46 = por %p44, %p45
      %s48 = sadd.s32 %s47, 1
      %p51 = scmp.eq.s32.totalorder %s13, 1
      %p52 = scmp.ne.s32.totalorder %s47, %s49
      %p53 = scmp.eq.s32.totalorder %s13, 0
      %p54 = por %p52, %p53
      %p55 = scmp.ne.s32.totalorder %s47, %s49
      %p56 = scmp.eq.s32.totalorder %s18, 1
      %p57 = por %p55, %p56
      %p58 = scmp.ne.s32.totalorder %s49, %s50
      %p59 = scmp.eq.s32.totalorder %s18, 0
      %p60 = por %p58, %p59
      %p61 = scmp.ne.s32.totalorder %s49, %s50
      %p62 = scmp.eq.s32.totalorder %s19, 1
      %p63 = por %p61, %p62
      %p65 = scmp.ne.s32.totalorder %s50, %s64
      %p66 = scmp.eq.s32.totalorder %s19, 0
      %p67 = por %p65, %p66
      %s69 = sadd.s32 %s68, 1
      %p72 = scmp.eq.s32.totalorder %s13, 1
      %p73 = scmp.ne.s32.totalorder %s68, %s70
      %p74 = scmp.eq.s32.totalorder %s13, 0
      %p75 = por %p73, %p74
      %p76 = scmp.ne.s32.totalorder %s68, %s70
      %p77 = scmp.eq.s32.totalorder %s18, 1
      %p78 = por %p76, %p77
      %p79 = scmp.ne.s32.totalorder %s70, %s71
      %p80 = scmp.eq.s32.totalorder %s18, 0
      %p81 = por %p79, %p80
      %p82 = scmp.ne.s32.totalorder %s70, %s71
      %p83 = scmp.eq.s32.totalorder %s19, 1
      %p84 = por %p82, %p83
      %p86 = scmp.ne.s32.totalorder %s71, %s85
      %p87 = scmp.eq.s32.totalorder %s19, 0
      %p88 = por %p86, %p87
      %s89 = ssub.s32 %s13, %s20
      %p90 = scmp.eq.s32.totalorder %s89, 0
      %s92 = sadd.s32 %s91, 1
      %s93 = scalar_select %p90, %s91, %s92
      %p96 = pneg %p90
      %p97 = scmp.eq.s32.totalorder %s13, 1
      %p98 = por %p96, %p97
      %p99 = scmp.ne.s32.totalorder %s91, %s94
      %p100 = scmp.eq.s32.totalorder %s13, 0
      %p101 = por %p99, %p100
      %p102 = scmp.ne.s32.totalorder %s91, %s94
      %p103 = scmp.eq.s32.totalorder %s18, 1
      %p104 = por %p102, %p103
      %p105 = scmp.ne.s32.totalorder %s94, %s95
      %p106 = scmp.eq.s32.totalorder %s18, 0
      %p107 = por %p105, %p106
      %p108 = scmp.ne.s32.totalorder %s94, %s95
      %p109 = scmp.eq.s32.totalorder %s19, 1
      %p110 = por %p108, %p109
      %p112 = scmp.ne.s32.totalorder %s95, %s111
      %p113 = scmp.eq.s32.totalorder %s19, 0
      %p114 = por %p112, %p113
      %p115 = scmp.le.s32.totalorder 1, %s13
      %p116 = scmp.lt.s32.totalorder %s13, 3
      %p117 = pnand %p115, %p116
      %p118 = pneg %p117
      // Predicated region
      $region9: #{tpu_custom_call.1} parent=5 // pred_check
        _
      $region10: #{tpu_custom_call.1} parent=5 // pred_check_branch
        %120 = sbr.rel (%p117) target = $region12
      $region11: #{tpu_custom_call.1} parent=5 // pred_region
        %s121 = ssub.s32 %s13, 1
        // Predicated region
        $region13: #{tpu_custom_call.1} parent=11 // pred_check
          %p122 = pneg %p60
        $region14: #{tpu_custom_call.1} parent=11 // pred_check_branch
          %124 = sbr.rel (%p122) target = $region16
        $region15: #{tpu_custom_call.1} parent=11 // pred_region
          _
        $region16: #{tpu_custom_call.1} parent=11 // pred_fallthru
          _
        // Predicated region
        $region17: #{tpu_custom_call.1} parent=11 // pred_check
          %p125 = pneg %p81
        $region18: #{tpu_custom_call.1} parent=11 // pred_check_branch
          %127 = sbr.rel (%p125) target = $region20
        $region19: #{tpu_custom_call.1} parent=11 // pred_region
          %s129 = ssub.s32 512, 512
          %130 = vsyncadd [#allocation3], %s129
          %s131 = sshll.u32 [#allocation2], 4
          %s132 = int_to_ptr.vmem [resolvable:$true] %s131
          %137 = dma.hbm_to_vmem [thread:$0]  %s2, 512, %s132, [#allocation3], 256, 256, 16
        $region20: #{tpu_custom_call.1} parent=11 // pred_fallthru
          _
      $region12: #{tpu_custom_call.1} parent=5 // pred_fallthru
        _
      %p138 = scmp.lt.s32.totalorder %s13, 2
      // Predicated region
      $region21: #{tpu_custom_call.1} parent=5 // pred_check
        %p139 = pneg %p138
      $region22: #{tpu_custom_call.1} parent=5 // pred_check_branch
        %141 = sbr.rel (%p139) target = $region24
      $region23: #{tpu_custom_call.1} parent=5 // pred_region
        // Predicated region
        $region25: #{tpu_custom_call.1} parent=23 // pred_check
          %p142 = pneg %p33
        $region26: #{tpu_custom_call.1} parent=23 // pred_check_branch
          %144 = sbr.rel (%p142) target = $region28
        $region27: #{tpu_custom_call.1} parent=23 // pred_region
          %p145 = scmp.lt.s32.totalorder %s13, 1
          %s146 = scalar_select %p145, %s13, 1
          %s147 = smul.addr %s146, 2
          %s148 = smul.addr %s147, 2
          %s149 = scalar_lea.vmem %s0, %s148
        $region28: #{tpu_custom_call.1} parent=23 // pred_fallthru
          _
      $region24: #{tpu_custom_call.1} parent=5 // pred_fallthru
        _
      %p150 = scmp.le.s32.totalorder 1, %s13
      %p151 = scmp.lt.s32.totalorder %s13, 3
      %p152 = pnand %p150, %p151
      %p153 = pneg %p152
      // Predicated region
      $region29: #{tpu_custom_call.1} parent=5 // pred_check
        _
      $region30: #{tpu_custom_call.1} parent=5 // pred_check_branch
        %155 = sbr.rel (%p152) target = $region32
      $region31: #{tpu_custom_call.1} parent=5 // pred_region
        %s156 = ssub.s32 %s13, 1
        // Predicated region
        $region33: #{tpu_custom_call.1} parent=31 // pred_check
          %p157 = pneg %p81
        $region34: #{tpu_custom_call.1} parent=31 // pred_check_branch
          %159 = sbr.rel (%p157) target = $region36
        $region35: #{tpu_custom_call.1} parent=31 // pred_region
          %160 = dma.done [#allocation3], 512
        $region36: #{tpu_custom_call.1} parent=31 // pred_fallthru
          _
        %p161 = scmp.lt.s32.totalorder %s18, 1
        %s162 = scalar_select %p161, %s18, 1
        %s163 = smul.addr %s162, 2
        %s164 = smul.addr %s163, 2
        %s165 = scalar_lea.vmem %s0, %s164
        %p166 = pneg %p39
        %p167 = pneg %p36
        %p168 = pneg %p60
        %p169 = pneg %p57
        %p170 = pneg %p81
        %p171 = pneg %p78
        %p172 = pneg %p107
        %p173 = pneg %p104
        %s174 = sand.u32 %s94, 1
        %s175 = scalar_lea.sflag [#allocation4], %s174
        %s176 = sand.u32 %s94, 1
        %s177 = smul.addr %s176, 8
        %s178 = scalar_lea.vmem [#allocation5], %s177
        %p179 = scmp.lt.s32.totalorder %s18, 1
        %s180 = scalar_select %p179, %s18, 1
        %s181 = smul.addr %s180, 2
        %s182 = smul.addr %s181, 2
        %s183 = scalar_lea.vmem %s0, %s182
        %v185 = vld [vmem:[%s1] sm:$0xf]
        %v186 = vld [vmem:[%s1 + $0x4] sm:$0x3]
        %v187 = vld [vmem:[%s183] sm:$0xf]
        %v190 = vunpack.c.l.b16 %v185
        %v191 = vunpack.c.l.b16 %v186
        %v192 = vpack.c.b16 %v191, %v190
        %v195 = vunpack.c.l.s4 1983009808
        %v196 = vunpack.c.0.s8 %v195
        %v197 = vlaneseq
        %v198 = vshrl.u32 %v197, 7
        %v199 = vsub.s32 %v196, %v198
        %v200 = vrot.slane %v187, %v199
        %v201 = vcombine.high %v200, %v200
        %vm202 = vcmask 31744
        %v204 = vsel %vm202, %v192, 0
        %vm206 = vcmask 1041408
        %v208 = vsel %vm206, %v200, 0
        %v211 = vsel %vm206, %v201, 0
        %213 = vmatprep.subr.bf16.mxu0 %v211
        %214 = vmatpush1.bf16.msra.mxu0 %v208
        %215 = vmatprep.subr.bf16.mxu0 0
        %216 = vmatpush1.bf16.msra.mxu0 0
        %217 = vmatprep.subr.bf16.mxu0 0
        %218 = vmatpush1.bf16.msra.mxu0 0
        %219 = vmatprep.subr.bf16.mxu0 0
        %220 = vmatpush1.bf16.msra.mxu0 0
        %221 = vmatprep.subr.bf16.mxu0 0
        %222 = vmatpush1.bf16.msra.mxu0 0
        %223 = vmatprep.subr.bf16.mxu0 0
        %224 = vmatpush1.bf16.msra.mxu0 0
        %225 = vmatprep.subr.bf16.mxu0 0
        %226 = vmatpush1.bf16.msra.mxu0 0
        %227 = vmatprep.subr.bf16.mxu0 0
        %228 = vmatpush1.bf16.msra.mxu0 0
        %229 = vmatprep.subr.bf16.mxu0 0
        %230 = vmatpush1.bf16.msra.mxu0 0
        %231 = vmatprep.subr.bf16.mxu0 0
        %232 = vmatpush1.bf16.msra.mxu0 0
        %233 = vmatprep.subr.bf16.mxu0 0
        %234 = vmatpush1.bf16.msra.mxu0 0
        %235 = vmatprep.subr.bf16.mxu0 0
        %236 = vmatpush1.bf16.msra.mxu0 0
        %237 = vmatprep.subr.bf16.mxu0 0
        %238 = vmatpush1.bf16.msra.mxu0 0
        %239 = vmatprep.subr.bf16.mxu0 0
        %240 = vmatpush1.bf16.msra.mxu0 0
        %241 = vmatprep.subr.bf16.mxu0 0
        %242 = vmatpush1.bf16.msra.mxu0 0
        %243 = vmatprep.subr.bf16.mxu0 0
        %244 = vmatpush1.bf16.msra.mxu0 0
        %245 = vmatprep.mubr.bf16.mxu0 0
        %246 = vmatmul.mubr.bf16.gmra.mrb[0].mxu0 %v204
        %v247 = vpop.f32.mrb[0].mxu0
        %v248 = vadd.f32 0.0, %v247
        %v249 = vpop.f32.mrb[0].mxu0
        %v250 = vadd.f32 0.0, %v249
        %v251 = vpop.f32.mrb[0].mxu0
        %v252 = vadd.f32 0.0, %v251
        %v253 = vpop.f32.mrb[0].mxu0
        %v254 = vadd.f32 0.0, %v253
        %255 = vdwg.mxu0
        %v258 = vrot.slane %v252, 4
        %v259 = vrot.slane %v254, 4
        %vm262 = vcmask 1043456
        %v263 = vsel %vm262, 0.0, %v258
        %v264 = vsel %vm262, 0.0, %v259
        %265 = vrot.lane.b32.xlu0 %v248, 17
        %v266 = vpop.permute.xlu0 %265
        %267 = vrot.lane.b32.xlu0 %v250, 17
        %v268 = vpop.permute.xlu0 %267
        %v269 = vlaneseq
        %v270 = vand.u32 %v269, 127
        %vm271 = vcmp.lt.s32.totalorder %v270, 17
        %v272 = vsel %vm271, %v266, %v268
        %v273 = vsel %vm271, %v268, %v266
        %v274 = vld [vmem:[#allocation2] ss:$8 sm:$0x3]
        %v275 = vmul.f32 %v263, %v273
        %v276 = vmul.f32 %v264, %v272
        %v277 = vrot.slane %v275, 4
        %v278 = vadd.f32 %v275, %v277
        %v279 = vrot.slane %v278, 2
        %v280 = vadd.f32 %v278, %v279
        %v281 = vrot.slane %v280, 1
        %v282 = vadd.f32 %v280, %v281
        %v283 = vrot.slane %v276, 4
        %v284 = vadd.f32 %v276, %v283
        %v285 = vrot.slane %v284, 2
        %v286 = vadd.f32 %v284, %v285
        %v287 = vrot.slane %v286, 1
        %v288 = vadd.f32 %v286, %v287
        %v290 = vlaneseq
        %v291 = vshrl.u32 %v290, 7
        %v292 = vsub.s32 0, %v291
        %v293 = vrot.slane %v274, %v292
        %v294 = vlaneseq
        %v295 = vshrl.u32 %v294, 7
        %v296 = vsub.s32 1, %v295
        %v297 = vrot.slane %v274, %v296
        %v300 = vmul.f32 %v282, %v293
        %v301 = vmul.f32 %v288, %v297
        %v302 = vmul.f32 %v293, %v273
        %v303 = vmul.f32 %v297, %v272
        %304 = vrot.lane.b32.xlu0 %v248, 16
        %v305 = vpop.permute.xlu0 %304
        %306 = vrot.lane.b32.xlu0 %v250, 16
        %v307 = vpop.permute.xlu0 %306
        %vm308 = vcmp.lt.s32.totalorder %v270, 16
        %v309 = vsel %vm308, %v305, %v307
        %v310 = vsel %vm308, %v307, %v305
        %s311 = scalar_lea.vmem [#allocation2], 1
        %v312 = vld [vmem:[%s311] ss:$8 sm:$0x3]
        %v313 = vmul.f32 %v263, %v310
        %v314 = vmul.f32 %v264, %v309
        %v315 = vrot.slane %v313, 4
        %v316 = vadd.f32 %v313, %v315
        %v317 = vrot.slane %v316, 2
        %v318 = vadd.f32 %v316, %v317
        %v319 = vrot.slane %v318, 1
        %v320 = vadd.f32 %v318, %v319
        %v321 = vrot.slane %v314, 4
        %v322 = vadd.f32 %v314, %v321
        %v323 = vrot.slane %v322, 2
        %v324 = vadd.f32 %v322, %v323
        %v325 = vrot.slane %v324, 1
        %v326 = vadd.f32 %v324, %v325
        %v328 = vlaneseq
        %v329 = vshrl.u32 %v328, 7
        %v330 = vsub.s32 0, %v329
        %v331 = vrot.slane %v312, %v330
        %v332 = vlaneseq
        %v333 = vshrl.u32 %v332, 7
        %v334 = vsub.s32 1, %v333
        %v335 = vrot.slane %v312, %v334
        %v338 = vmul.f32 %v320, %v331
        %v339 = vmul.f32 %v326, %v335
        %v340 = vmax.f32 %v300, %v338
        %v341 = vmax.f32 %v301, %v339
        %v342 = vsub.f32 %v300, %v340
        %v343 = vsub.f32 %v301, %v341
        %v344 = vmul.f32 %v342, 1.442695
        %v345 = vpow.pop %v344
        %v346 = vmul.f32 %v343, 1.442695
        %v347 = vpow.pop %v346
        %v348 = vsub.f32 %v338, %v340
        %v349 = vsub.f32 %v339, %v341
        %v350 = vmul.f32 %v348, 1.442695
        %v351 = vpow.pop %v350
        %v352 = vmul.f32 %v349, 1.442695
        %v353 = vpow.pop %v352
        %v354 = vadd.f32 %v345, %v351
        %v355 = vadd.f32 %v347, %v353
        %v356 = vlaneseq
        %v357 = vshrl.u32 %v356, 7
        %v358 = vsub.s32 0, %v357
        %v359 = vrot.slane %v345, %v358
        %v360 = vlaneseq
        %v361 = vshrl.u32 %v360, 7
        %v362 = vsub.s32 0, %v361
        %v363 = vrot.slane %v347, %v362
        %v364 = vmul.f32 %v359, %v302
        %v365 = vmul.f32 %v363, %v303
        %v366 = vmul.f32 %v351, %v331
        %v367 = vmul.f32 %v353, %v335
        %v368 = vlaneseq
        %v369 = vshrl.u32 %v368, 7
        %v370 = vsub.s32 0, %v369
        %v371 = vrot.slane %v366, %v370
        %v372 = vlaneseq
        %v373 = vshrl.u32 %v372, 7
        %v374 = vsub.s32 0, %v373
        %v375 = vrot.slane %v367, %v374
        %v376 = vmul.f32 %v371, %v310
        %v377 = vmul.f32 %v375, %v309
        %v378 = vadd.f32 %v364, %v376
        %v379 = vadd.f32 %v365, %v377
        %380 = vrot.lane.b32.xlu0 %v248, 15
        %v381 = vpop.permute.xlu0 %380
        %382 = vrot.lane.b32.xlu0 %v250, 15
        %v383 = vpop.permute.xlu0 %382
        %vm384 = vcmp.lt.s32.totalorder %v270, 15
        %v385 = vsel %vm384, %v381, %v383
        %v386 = vsel %vm384, %v383, %v381
        %s387 = scalar_lea.vmem [#allocation2], 2
        %v388 = vld [vmem:[%s387] ss:$8 sm:$0x3]
        %v389 = vmul.f32 %v263, %v386
        %v390 = vmul.f32 %v264, %v385
        %v391 = vrot.slane %v389, 4
        %v392 = vadd.f32 %v389, %v391
        %v393 = vrot.slane %v392, 2
        %v394 = vadd.f32 %v392, %v393
        %v395 = vrot.slane %v394, 1
        %v396 = vadd.f32 %v394, %v395
        %v397 = vrot.slane %v390, 4
        %v398 = vadd.f32 %v390, %v397
        %v399 = vrot.slane %v398, 2
        %v400 = vadd.f32 %v398, %v399
        %v401 = vrot.slane %v400, 1
        %v402 = vadd.f32 %v400, %v401
        %v404 = vlaneseq
        %v405 = vshrl.u32 %v404, 7
        %v406 = vsub.s32 0, %v405
        %v407 = vrot.slane %v388, %v406
        %v408 = vlaneseq
        %v409 = vshrl.u32 %v408, 7
        %v410 = vsub.s32 1, %v409
        %v411 = vrot.slane %v388, %v410
        %v414 = vmul.f32 %v396, %v407
        %v415 = vmul.f32 %v402, %v411
        %v416 = vmax.f32 %v340, %v414
        %v417 = vmax.f32 %v341, %v415
        %v418 = vsub.f32 %v340, %v416
        %v419 = vsub.f32 %v341, %v417
        %v420 = vmul.f32 %v418, 1.442695
        %v421 = vpow.pop %v420
        %v422 = vmul.f32 %v419, 1.442695
        %v423 = vpow.pop %v422
        %v424 = vsub.f32 %v414, %v416
        %v425 = vsub.f32 %v415, %v417
        %v426 = vmul.f32 %v424, 1.442695
        %v427 = vpow.pop %v426
        %v428 = vmul.f32 %v425, 1.442695
        %v429 = vpow.pop %v428
        %v430 = vmul.f32 %v421, %v354
        %v431 = vmul.f32 %v423, %v355
        %v432 = vadd.f32 %v430, %v427
        %v433 = vadd.f32 %v431, %v429
        %v434 = vlaneseq
        %v435 = vshrl.u32 %v434, 7
        %v436 = vsub.s32 0, %v435
        %v437 = vrot.slane %v421, %v436
        %v438 = vlaneseq
        %v439 = vshrl.u32 %v438, 7
        %v440 = vsub.s32 0, %v439
        %v441 = vrot.slane %v423, %v440
        %v442 = vmul.f32 %v437, %v378
        %v443 = vmul.f32 %v441, %v379
        %v444 = vmul.f32 %v427, %v407
        %v445 = vmul.f32 %v429, %v411
        %v446 = vlaneseq
        %v447 = vshrl.u32 %v446, 7
        %v448 = vsub.s32 0, %v447
        %v449 = vrot.slane %v444, %v448
        %v450 = vlaneseq
        %v451 = vshrl.u32 %v450, 7
        %v452 = vsub.s32 0, %v451
        %v453 = vrot.slane %v445, %v452
        %v454 = vmul.f32 %v449, %v386
        %v455 = vmul.f32 %v453, %v385
        %v456 = vadd.f32 %v442, %v454
        %v457 = vadd.f32 %v443, %v455
        %458 = vrot.lane.b32.xlu0 %v248, 1
        %v459 = vpop.permute.xlu0 %458
        %460 = vrot.lane.b32.xlu0 %v250, 1
        %v461 = vpop.permute.xlu0 %460
        %vm462 = vcmp.lt.s32.totalorder %v270, 1
        %v463 = vsel %vm462, %v459, %v461
        %v464 = vsel %vm462, %v461, %v459
        %s465 = scalar_lea.vmem [#allocation2], 3
        %v466 = vld [vmem:[%s465] ss:$8 sm:$0x3]
        %v467 = vmul.f32 %v263, %v464
        %v468 = vmul.f32 %v264, %v463
        %v469 = vrot.slane %v467, 4
        %v470 = vadd.f32 %v467, %v469
        %v471 = vrot.slane %v470, 2
        %v472 = vadd.f32 %v470, %v471
        %v473 = vrot.slane %v472, 1
        %v474 = vadd.f32 %v472, %v473
        %v475 = vrot.slane %v468, 4
        %v476 = vadd.f32 %v468, %v475
        %v477 = vrot.slane %v476, 2
        %v478 = vadd.f32 %v476, %v477
        %v479 = vrot.slane %v478, 1
        %v480 = vadd.f32 %v478, %v479
        %v482 = vlaneseq
        %v483 = vshrl.u32 %v482, 7
        %v484 = vsub.s32 0, %v483
        %v485 = vrot.slane %v466, %v484
        %v486 = vlaneseq
        %v487 = vshrl.u32 %v486, 7
        %v488 = vsub.s32 1, %v487
        %v489 = vrot.slane %v466, %v488
        %v492 = vmul.f32 %v474, %v485
        %v493 = vmul.f32 %v480, %v489
        %v494 = vmax.f32 %v416, %v492
        %v495 = vmax.f32 %v417, %v493
        %v496 = vsub.f32 %v416, %v494
        %v497 = vsub.f32 %v417, %v495
        %v498 = vmul.f32 %v496, 1.442695
        %v499 = vpow.pop %v498
        %v500 = vmul.f32 %v497, 1.442695
        %v501 = vpow.pop %v500
        %v502 = vsub.f32 %v492, %v494
        %v503 = vsub.f32 %v493, %v495
        %v504 = vmul.f32 %v502, 1.442695
        %v505 = vpow.pop %v504
        %v506 = vmul.f32 %v503, 1.442695
        %v507 = vpow.pop %v506
        %v508 = vmul.f32 %v499, %v432
        %v509 = vmul.f32 %v501, %v433
        %v510 = vadd.f32 %v508, %v505
        %v511 = vadd.f32 %v509, %v507
        %v512 = vlaneseq
        %v513 = vshrl.u32 %v512, 7
        %v514 = vsub.s32 0, %v513
        %v515 = vrot.slane %v499, %v514
        %v516 = vlaneseq
        %v517 = vshrl.u32 %v516, 7
        %v518 = vsub.s32 0, %v517
        %v519 = vrot.slane %v501, %v518
        %v520 = vmul.f32 %v515, %v456
        %v521 = vmul.f32 %v519, %v457
        %v522 = vmul.f32 %v505, %v485
        %v523 = vmul.f32 %v507, %v489
        %v524 = vlaneseq
        %v525 = vshrl.u32 %v524, 7
        %v526 = vsub.s32 0, %v525
        %v527 = vrot.slane %v522, %v526
        %v528 = vlaneseq
        %v529 = vshrl.u32 %v528, 7
        %v530 = vsub.s32 0, %v529
        %v531 = vrot.slane %v523, %v530
        %v532 = vmul.f32 %v527, %v464
        %v533 = vmul.f32 %v531, %v463
        %v534 = vadd.f32 %v520, %v532
        %v535 = vadd.f32 %v521, %v533
        %s536 = scalar_lea.vmem [#allocation2], 4
        %v537 = vld [vmem:[%s536] ss:$8 sm:$0x3]
        %v538 = vmul.f32 %v263, %v248
        %v539 = vmul.f32 %v264, %v250
        %v540 = vrot.slane %v538, 4
        %v541 = vadd.f32 %v538, %v540
        %v542 = vrot.slane %v541, 2
        %v543 = vadd.f32 %v541, %v542
        %v544 = vrot.slane %v543, 1
        %v545 = vadd.f32 %v543, %v544
        %v546 = vrot.slane %v539, 4
        %v547 = vadd.f32 %v539, %v546
        %v548 = vrot.slane %v547, 2
        %v549 = vadd.f32 %v547, %v548
        %v550 = vrot.slane %v549, 1
        %v551 = vadd.f32 %v549, %v550
        %v553 = vlaneseq
        %v554 = vshrl.u32 %v553, 7
        %v555 = vsub.s32 0, %v554
        %v556 = vrot.slane %v537, %v555
        %v557 = vlaneseq
        %v558 = vshrl.u32 %v557, 7
        %v559 = vsub.s32 1, %v558
        %v560 = vrot.slane %v537, %v559
        %v563 = vmul.f32 %v545, %v556
        %v564 = vmul.f32 %v551, %v560
        %v565 = vmax.f32 %v494, %v563
        %v566 = vmax.f32 %v495, %v564
        %v567 = vsub.f32 %v494, %v565
        %v568 = vsub.f32 %v495, %v566
        %v569 = vmul.f32 %v567, 1.442695
        %v570 = vpow.pop %v569
        %v571 = vmul.f32 %v568, 1.442695
        %v572 = vpow.pop %v571
        %v573 = vsub.f32 %v563, %v565
        %v574 = vsub.f32 %v564, %v566
        %v575 = vmul.f32 %v573, 1.442695
        %v576 = vpow.pop %v575
        %v577 = vmul.f32 %v574, 1.442695
        %v578 = vpow.pop %v577
        %v579 = vmul.f32 %v570, %v510
        %v580 = vmul.f32 %v572, %v511
        %v581 = vadd.f32 %v579, %v576
        %v582 = vadd.f32 %v580, %v578
        %v583 = vlaneseq
        %v584 = vshrl.u32 %v583, 7
        %v585 = vsub.s32 0, %v584
        %v586 = vrot.slane %v570, %v585
        %v587 = vlaneseq
        %v588 = vshrl.u32 %v587, 7
        %v589 = vsub.s32 0, %v588
        %v590 = vrot.slane %v572, %v589
        %v591 = vmul.f32 %v586, %v534
        %v592 = vmul.f32 %v590, %v535
        %v593 = vmul.f32 %v576, %v556
        %v594 = vmul.f32 %v578, %v560
        %v595 = vlaneseq
        %v596 = vshrl.u32 %v595, 7
        %v597 = vsub.s32 0, %v596
        %v598 = vrot.slane %v593, %v597
        %v599 = vlaneseq
        %v600 = vshrl.u32 %v599, 7
        %v601 = vsub.s32 0, %v600
        %v602 = vrot.slane %v594, %v601
        %v603 = vmul.f32 %v598, %v248
        %v604 = vmul.f32 %v602, %v250
        %v605 = vadd.f32 %v591, %v603
        %v606 = vadd.f32 %v592, %v604
        %607 = vrot.lane.b32.xlu0 %v248, 127
        %v608 = vpop.permute.xlu0 %607
        %609 = vrot.lane.b32.xlu0 %v250, 127
        %v610 = vpop.permute.xlu0 %609
        %vm611 = vcmp.lt.s32.totalorder %v270, 127
        %v612 = vsel %vm611, %v608, %v610
        %v613 = vsel %vm611, %v610, %v608
        %s614 = scalar_lea.vmem [#allocation2], 5
        %v615 = vld [vmem:[%s614] ss:$8 sm:$0x3]
        %v616 = vmul.f32 %v263, %v612
        %v617 = vmul.f32 %v264, %v613
        %v618 = vrot.slane %v616, 4
        %v619 = vadd.f32 %v616, %v618
        %v620 = vrot.slane %v619, 2
        %v621 = vadd.f32 %v619, %v620
        %v622 = vrot.slane %v621, 1
        %v623 = vadd.f32 %v621, %v622
        %v624 = vrot.slane %v617, 4
        %v625 = vadd.f32 %v617, %v624
        %v626 = vrot.slane %v625, 2
        %v627 = vadd.f32 %v625, %v626
        %v628 = vrot.slane %v627, 1
        %v629 = vadd.f32 %v627, %v628
        %v631 = vlaneseq
        %v632 = vshrl.u32 %v631, 7
        %v633 = vsub.s32 0, %v632
        %v634 = vrot.slane %v615, %v633
        %v635 = vlaneseq
        %v636 = vshrl.u32 %v635, 7
        %v637 = vsub.s32 1, %v636
        %v638 = vrot.slane %v615, %v637
        %v641 = vmul.f32 %v623, %v634
        %v642 = vmul.f32 %v629, %v638
        %v643 = vmax.f32 %v565, %v641
        %v644 = vmax.f32 %v566, %v642
        %v645 = vsub.f32 %v565, %v643
        %v646 = vsub.f32 %v566, %v644
        %v647 = vmul.f32 %v645, 1.442695
        %v648 = vpow.pop %v647
        %v649 = vmul.f32 %v646, 1.442695
        %v650 = vpow.pop %v649
        %v651 = vsub.f32 %v641, %v643
        %v652 = vsub.f32 %v642, %v644
        %v653 = vmul.f32 %v651, 1.442695
        %v654 = vpow.pop %v653
        %v655 = vmul.f32 %v652, 1.442695
        %v656 = vpow.pop %v655
        %v657 = vmul.f32 %v648, %v581
        %v658 = vmul.f32 %v650, %v582
        %v659 = vadd.f32 %v657, %v654
        %v660 = vadd.f32 %v658, %v656
        %v661 = vlaneseq
        %v662 = vshrl.u32 %v661, 7
        %v663 = vsub.s32 0, %v662
        %v664 = vrot.slane %v648, %v663
        %v665 = vlaneseq
        %v666 = vshrl.u32 %v665, 7
        %v667 = vsub.s32 0, %v666
        %v668 = vrot.slane %v650, %v667
        %v669 = vmul.f32 %v664, %v605
        %v670 = vmul.f32 %v668, %v606
        %v671 = vmul.f32 %v654, %v634
        %v672 = vmul.f32 %v656, %v638
        %v673 = vlaneseq
        %v674 = vshrl.u32 %v673, 7
        %v675 = vsub.s32 0, %v674
        %v676 = vrot.slane %v671, %v675
        %v677 = vlaneseq
        %v678 = vshrl.u32 %v677, 7
        %v679 = vsub.s32 0, %v678
        %v680 = vrot.slane %v672, %v679
        %v681 = vmul.f32 %v676, %v612
        %v682 = vmul.f32 %v680, %v613
        %v683 = vadd.f32 %v669, %v681
        %v684 = vadd.f32 %v670, %v682
        %685 = vrot.lane.b32.xlu0 %v248, 113
        %v686 = vpop.permute.xlu0 %685
        %687 = vrot.lane.b32.xlu0 %v250, 113
        %v688 = vpop.permute.xlu0 %687
        %vm689 = vcmp.lt.s32.totalorder %v270, 113
        %v690 = vsel %vm689, %v686, %v688
        %v691 = vsel %vm689, %v688, %v686
        %s692 = scalar_lea.vmem [#allocation2], 6
        %v693 = vld [vmem:[%s692] ss:$8 sm:$0x3]
        %v694 = vmul.f32 %v263, %v690
        %v695 = vmul.f32 %v264, %v691
        %v696 = vrot.slane %v694, 4
        %v697 = vadd.f32 %v694, %v696
        %v698 = vrot.slane %v697, 2
        %v699 = vadd.f32 %v697, %v698
        %v700 = vrot.slane %v699, 1
        %v701 = vadd.f32 %v699, %v700
        %v702 = vrot.slane %v695, 4
        %v703 = vadd.f32 %v695, %v702
        %v704 = vrot.slane %v703, 2
        %v705 = vadd.f32 %v703, %v704
        %v706 = vrot.slane %v705, 1
        %v707 = vadd.f32 %v705, %v706
        %v709 = vlaneseq
        %v710 = vshrl.u32 %v709, 7
        %v711 = vsub.s32 0, %v710
        %v712 = vrot.slane %v693, %v711
        %v713 = vlaneseq
        %v714 = vshrl.u32 %v713, 7
        %v715 = vsub.s32 1, %v714
        %v716 = vrot.slane %v693, %v715
        %v719 = vmul.f32 %v701, %v712
        %v720 = vmul.f32 %v707, %v716
        %v721 = vmax.f32 %v643, %v719
        %v722 = vmax.f32 %v644, %v720
        %v723 = vsub.f32 %v643, %v721
        %v724 = vsub.f32 %v644, %v722
        %v725 = vmul.f32 %v723, 1.442695
        %v726 = vpow.pop %v725
        %v727 = vmul.f32 %v724, 1.442695
        %v728 = vpow.pop %v727
        %v729 = vsub.f32 %v719, %v721
        %v730 = vsub.f32 %v720, %v722
        %v731 = vmul.f32 %v729, 1.442695
        %v732 = vpow.pop %v731
        %v733 = vmul.f32 %v730, 1.442695
        %v734 = vpow.pop %v733
        %v735 = vmul.f32 %v726, %v659
        %v736 = vmul.f32 %v728, %v660
        %v737 = vadd.f32 %v735, %v732
        %v738 = vadd.f32 %v736, %v734
        %v739 = vlaneseq
        %v740 = vshrl.u32 %v739, 7
        %v741 = vsub.s32 0, %v740
        %v742 = vrot.slane %v726, %v741
        %v743 = vlaneseq
        %v744 = vshrl.u32 %v743, 7
        %v745 = vsub.s32 0, %v744
        %v746 = vrot.slane %v728, %v745
        %v747 = vmul.f32 %v742, %v683
        %v748 = vmul.f32 %v746, %v684
        %v749 = vmul.f32 %v732, %v712
        %v750 = vmul.f32 %v734, %v716
        %v751 = vlaneseq
        %v752 = vshrl.u32 %v751, 7
        %v753 = vsub.s32 0, %v752
        %v754 = vrot.slane %v749, %v753
        %v755 = vlaneseq
        %v756 = vshrl.u32 %v755, 7
        %v757 = vsub.s32 0, %v756
        %v758 = vrot.slane %v750, %v757
        %v759 = vmul.f32 %v754, %v690
        %v760 = vmul.f32 %v758, %v691
        %v761 = vadd.f32 %v747, %v759
        %v762 = vadd.f32 %v748, %v760
        %763 = vrot.lane.b32.xlu0 %v248, 112
        %v764 = vpop.permute.xlu0 %763
        %765 = vrot.lane.b32.xlu0 %v250, 112
        %v766 = vpop.permute.xlu0 %765
        %vm767 = vcmp.lt.s32.totalorder %v270, 112
        %v768 = vsel %vm767, %v764, %v766
        %v769 = vsel %vm767, %v766, %v764
        %s770 = scalar_lea.vmem [#allocation2], 7
        %v771 = vld [vmem:[%s770] ss:$8 sm:$0x3]
        %v772 = vmul.f32 %v263, %v768
        %v773 = vmul.f32 %v264, %v769
        %v774 = vrot.slane %v772, 4
        %v775 = vadd.f32 %v772, %v774
        %v776 = vrot.slane %v775, 2
        %v777 = vadd.f32 %v775, %v776
        %v778 = vrot.slane %v777, 1
        %v779 = vadd.f32 %v777, %v778
        %v780 = vrot.slane %v773, 4
        %v781 = vadd.f32 %v773, %v780
        %v782 = vrot.slane %v781, 2
        %v783 = vadd.f32 %v781, %v782
        %v784 = vrot.slane %v783, 1
        %v785 = vadd.f32 %v783, %v784
        %v787 = vlaneseq
        %v788 = vshrl.u32 %v787, 7
        %v789 = vsub.s32 0, %v788
        %v790 = vrot.slane %v771, %v789
        %v791 = vlaneseq
        %v792 = vshrl.u32 %v791, 7
        %v793 = vsub.s32 1, %v792
        %v794 = vrot.slane %v771, %v793
        %v797 = vmul.f32 %v779, %v790
        %v798 = vmul.f32 %v785, %v794
        %v799 = vmax.f32 %v721, %v797
        %v800 = vmax.f32 %v722, %v798
        %v801 = vsub.f32 %v721, %v799
        %v802 = vsub.f32 %v722, %v800
        %v803 = vmul.f32 %v801, 1.442695
        %v804 = vpow.pop %v803
        %v805 = vmul.f32 %v802, 1.442695
        %v806 = vpow.pop %v805
        %v807 = vsub.f32 %v797, %v799
        %v808 = vsub.f32 %v798, %v800
        %v809 = vmul.f32 %v807, 1.442695
        %v810 = vpow.pop %v809
        %v811 = vmul.f32 %v808, 1.442695
        %v812 = vpow.pop %v811
        %v813 = vmul.f32 %v804, %v737
        %v814 = vmul.f32 %v806, %v738
        %v815 = vadd.f32 %v813, %v810
        %v816 = vadd.f32 %v814, %v812
        %v817 = vlaneseq
        %v818 = vshrl.u32 %v817, 7
        %v819 = vsub.s32 0, %v818
        %v820 = vrot.slane %v804, %v819
        %v821 = vlaneseq
        %v822 = vshrl.u32 %v821, 7
        %v823 = vsub.s32 0, %v822
        %v824 = vrot.slane %v806, %v823
        %v825 = vmul.f32 %v820, %v761
        %v826 = vmul.f32 %v824, %v762
        %v827 = vmul.f32 %v810, %v790
        %v828 = vmul.f32 %v812, %v794
        %v829 = vlaneseq
        %v830 = vshrl.u32 %v829, 7
        %v831 = vsub.s32 0, %v830
        %v832 = vrot.slane %v827, %v831
        %v833 = vlaneseq
        %v834 = vshrl.u32 %v833, 7
        %v835 = vsub.s32 0, %v834
        %v836 = vrot.slane %v828, %v835
        %v837 = vmul.f32 %v832, %v768
        %v838 = vmul.f32 %v836, %v769
        %v839 = vadd.f32 %v825, %v837
        %v840 = vadd.f32 %v826, %v838
        %841 = vrot.lane.b32.xlu0 %v248, 111
        %v842 = vpop.permute.xlu0 %841
        %843 = vrot.lane.b32.xlu0 %v250, 111
        %v844 = vpop.permute.xlu0 %843
        %vm845 = vcmp.lt.s32.totalorder %v270, 111
        %v846 = vsel %vm845, %v842, %v844
        %v847 = vsel %vm845, %v844, %v842
        %s848 = scalar_lea.vmem [#allocation2], 16
        %v849 = vld [vmem:[%s848] ss:$8 sm:$0x3]
        %v850 = vmul.f32 %v263, %v846
        %v851 = vmul.f32 %v264, %v847
        %v852 = vrot.slane %v850, 4
        %v853 = vadd.f32 %v850, %v852
        %v854 = vrot.slane %v853, 2
        %v855 = vadd.f32 %v853, %v854
        %v856 = vrot.slane %v855, 1
        %v857 = vadd.f32 %v855, %v856
        %v858 = vrot.slane %v851, 4
        %v859 = vadd.f32 %v851, %v858
        %v860 = vrot.slane %v859, 2
        %v861 = vadd.f32 %v859, %v860
        %v862 = vrot.slane %v861, 1
        %v863 = vadd.f32 %v861, %v862
        %v865 = vlaneseq
        %v866 = vshrl.u32 %v865, 7
        %v867 = vsub.s32 0, %v866
        %v868 = vrot.slane %v849, %v867
        %v869 = vlaneseq
        %v870 = vshrl.u32 %v869, 7
        %v871 = vsub.s32 1, %v870
        %v872 = vrot.slane %v849, %v871
        %v875 = vmul.f32 %v857, %v868
        %v876 = vmul.f32 %v863, %v872
        %v877 = vmax.f32 %v799, %v875
        %v878 = vmax.f32 %v800, %v876
        %v879 = vsub.f32 %v799, %v877
        %v880 = vsub.f32 %v800, %v878
        %v881 = vmul.f32 %v879, 1.442695
        %v882 = vpow.pop %v881
        %v883 = vmul.f32 %v880, 1.442695
        %v884 = vpow.pop %v883
        %v885 = vsub.f32 %v875, %v877
        %v886 = vsub.f32 %v876, %v878
        %v887 = vmul.f32 %v885, 1.442695
        %v888 = vpow.pop %v887
        %v889 = vmul.f32 %v886, 1.442695
        %v890 = vpow.pop %v889
        %v891 = vmul.f32 %v882, %v815
        %v892 = vmul.f32 %v884, %v816
        %v893 = vadd.f32 %v891, %v888
        %v894 = vadd.f32 %v892, %v890
        %v895 = vlaneseq
        %v896 = vshrl.u32 %v895, 7
        %v897 = vsub.s32 0, %v896
        %v898 = vrot.slane %v882, %v897
        %v899 = vlaneseq
        %v900 = vshrl.u32 %v899, 7
        %v901 = vsub.s32 0, %v900
        %v902 = vrot.slane %v884, %v901
        %v903 = vmul.f32 %v898, %v839
        %v904 = vmul.f32 %v902, %v840
        %v905 = vmul.f32 %v888, %v868
        %v906 = vmul.f32 %v890, %v872
        %v907 = vlaneseq
        %v908 = vshrl.u32 %v907, 7
        %v909 = vsub.s32 0, %v908
        %v910 = vrot.slane %v905, %v909
        %v911 = vlaneseq
        %v912 = vshrl.u32 %v911, 7
        %v913 = vsub.s32 0, %v912
        %v914 = vrot.slane %v906, %v913
        %v915 = vmul.f32 %v910, %v846
        %v916 = vmul.f32 %v914, %v847
        %v917 = vadd.f32 %v903, %v915
        %v918 = vadd.f32 %v904, %v916
        %v919 = vrcp.pop %v893
        %v920 = vrcp.pop %v894
        %v921 = vmul.f32 %v893, %v919
        %v922 = vmul.f32 %v894, %v920
        %v923 = vsub.f32 2.0, %v921
        %v924 = vsub.f32 2.0, %v922
        %v925 = vmul.f32 %v919, %v923
        %v926 = vmul.f32 %v920, %v924
        %v927 = vlaneseq
        %v928 = vshrl.u32 %v927, 7
        %v929 = vsub.s32 0, %v928
        %v930 = vrot.slane %v925, %v929
        %v931 = vlaneseq
        %v932 = vshrl.u32 %v931, 7
        %v933 = vsub.s32 0, %v932
        %v934 = vrot.slane %v926, %v933
        %v935 = vmul.f32 %v917, %v930
        %v936 = vmul.f32 %v918, %v934
        %v939 = vcombine.low %v935, %v936
        %941 = vst [vmem:[%s178] sm:$0xff] %v939
        %s942 = sand.u32 %s94, 1
        %s943 = scalar_lea.sflag [#allocation4], %s942
        %s944 = sand.u32 %s94, 1
        %s945 = smul.addr %s944, 8
        %s946 = scalar_lea.vmem [#allocation5], %s945
        // Predicated region
        $region37: #{tpu_custom_call.1} parent=31 // pred_check
          %p947 = pneg %p104
        $region38: #{tpu_custom_call.1} parent=31 // pred_check_branch
          %949 = sbr.rel (%p947) target = $region40
        $region39: #{tpu_custom_call.1} parent=31 // pred_region
          %s951 = ssub.s32 128, 128
          %952 = vsyncadd %s943, %s951
          %s953 = smul.addr %s18, 2
          %s954 = smul.addr %s953, 64
          %s955 = scalar_lea.hbm %s3, %s954
          %s957 = sshll.u32 %s946, 4
          %s958 = int_to_ptr.vmem [resolvable:$true] %s957
          %960 = dma.vmem_to_hbm [thread:$0]  %s958, 128, %s955, %s943
        $region40: #{tpu_custom_call.1} parent=31 // pred_fallthru
          _
      $region32: #{tpu_custom_call.1} parent=5 // pred_fallthru
        _
      %p961 = scmp.le.s32.totalorder 2, %s13
      // Predicated region
      $region41: #{tpu_custom_call.1} parent=5 // pred_check
        %p962 = pneg %p961
      $region42: #{tpu_custom_call.1} parent=5 // pred_check_branch
        %964 = sbr.rel (%p962) target = $region44
      $region43: #{tpu_custom_call.1} parent=5 // pred_region
        %s965 = ssub.s32 %s13, 2
        // Predicated region
        $region45: #{tpu_custom_call.1} parent=43 // pred_check
          %p966 = pneg %p110
        $region46: #{tpu_custom_call.1} parent=43 // pred_check_branch
          %968 = sbr.rel (%p966) target = $region48
        $region47: #{tpu_custom_call.1} parent=43 // pred_region
          %s969 = sand.u32 %s95, 1
          %s970 = scalar_lea.sflag [#allocation4], %s969
          %s971 = sand.u32 %s95, 1
          %s972 = smul.addr %s971, 8
          %s973 = scalar_lea.vmem [#allocation5], %s972
          %974 = dma.done %s970, 128
        $region48: #{tpu_custom_call.1} parent=43 // pred_fallthru
          _
      $region44: #{tpu_custom_call.1} parent=5 // pred_fallthru
        _
    $region6: #{tpu_custom_call.1} parent=1 // loop_footer
      %s17 = sadd.s32 1, %s13
    $region7: #{tpu_custom_call.1} parent=1 // loop_footer_branch
      %12 = sbr.rel target = $region3
    $region8: #{tpu_custom_call.1} parent=1 // loop_exit
      _
    %975 = vsyncpa [#allocation3], 1
    %s976 = scalar_lea.sflag [#allocation3], 1
    %977 = vsyncpa %s976, 1
    %978 = vsyncpa [#allocation4], 1
    %s979 = scalar_lea.sflag [#allocation4], 1
    %980 = vsyncpa %s979, 1

</llo_original>
